<compile_context>
chip_gen: v7x
topology: tpu7x:2x2x1
jax: 0.10.0
libtpu: 0.0.40
codegen_flags: <defaults>
</compile_context>

<pallas_src>
import jax
import jax.numpy as jnp
from jax.experimental import pallas as pl
from jax.experimental.pallas import tpu as pltpu


def _round_up(a: int, b: int) -> int:
    return ((a + b - 1) // b) * b


def _embed_kernel(x_ref, w1_ref, b1_ref, w2_ref, b2_ref, mask_ref, o_ref, acc_ref):
    # Grid = (batch_tile i, feature_tile k).  Per step:
    #   x_ref:    (TILE_N, TILE_K) bf16   image slab for this (i, k)
    #   w1_ref:   (TILE_K, H_PAD)  bf16   first-layer weight slab for this k
    #   b1_ref:   (1, H_PAD)       f32
    #   w2_ref:   (H_PAD, D_PAD)   bf16   (VMEM-resident, constant index_map)
    #   b2_ref:   (1, D_PAD)       f32
    #   mask_ref: (TILE_N, D_PAD)  f32    per-sample condition mask
    #   o_ref:    (TILE_N, D_PAD)  f32    output (written at last k)
    #   acc_ref:  (TILE_N, H_PAD)  f32    hidden-layer accumulator scratch
    k = pl.program_id(1)

    @pl.when(k == 0)
    def _init():
        acc_ref[...] = jnp.zeros_like(acc_ref)

    # First matmul, accumulated over the K (feature) grid axis on the MXU.
    acc_ref[...] += jnp.dot(x_ref[...], w1_ref[...],
                            preferred_element_type=jnp.float32)

    @pl.when(k == pl.num_programs(1) - 1)
    def _finalize():
        # Epilogue in f32 on the VPU (bias + ReLU), second matmul in bf16 on
        # the MXU with f32 accumulation, then the per-condition mask apply.
        h = jnp.maximum(acc_ref[...] + b1_ref[...], 0.0)
        e = jnp.dot(h.astype(w2_ref.dtype), w2_ref[...],
                    preferred_element_type=jnp.float32) + b2_ref[...]
        o_ref[...] = (e * mask_ref[...]).astype(o_ref.dtype)


def cs_tripletnet_forward(x, y, z, c, params, *, tile_n_max=256, tile_k_max=512):
    """x, y, z: (N, C, H, W) images; c: (N,) int32 condition indices.

    Returns (embedded_x, embedded_y, embedded_z), each (N, D)."""
    n = x.shape[0]
    feat, h1 = params["w1"].shape
    d = params["w2"].shape[1]

    # Lane-dense padded sizes (multiples of 128 on the last dims).
    h_pad = _round_up(h1, 128)
    d_pad = _round_up(d, 128)
    f_pad = _round_up(feat, 128)
    tile_k = min(tile_k_max, f_pad)
    f_pad = _round_up(f_pad, tile_k)

    n3 = 3 * n
    tile_n = min(tile_n_max, _round_up(n3, 8))
    n3_pad = _round_up(n3, tile_n)

    # Fuse anchor / negative / positive into one (3N, F) batch.  The bf16 cast
    # rides along with the concat (one HBM write, half the bytes the kernel
    # has to read back).
    xf = jnp.concatenate(
        [x.reshape(n, -1), y.reshape(n, -1), z.reshape(n, -1)], axis=0
    ).astype(jnp.bfloat16)
    xf = jnp.pad(xf, ((0, n3_pad - n3), (0, f_pad - feat)))

    # Condition mask: tiny table gather in XLA instead of a K=n_cond one-hot
    # matmul on the MXU.  Out-of-range indices are clamped by the gather
    # (PyTorch nn.Embedding would raise instead).
    c3 = jnp.tile(c.astype(jnp.int32), 3)
    masks_p = jnp.pad(params["masks"].astype(jnp.float32),
                      ((0, 0), (0, d_pad - d)))
    mask3 = jnp.pad(masks_p[c3], ((0, n3_pad - n3), (0, 0)))

    # Weights: zero-pad to lane-dense shapes, bf16 for the MXU operands,
    # biases stay f32 for the VPU epilogue.
    w1 = jnp.pad(params["w1"],
                 ((0, f_pad - feat), (0, h_pad - h1))).astype(jnp.bfloat16)
    b1 = jnp.pad(params["b1"].astype(jnp.float32), ((0, 0), (0, h_pad - h1)))
    w2 = jnp.pad(params["w2"],
                 ((0, h_pad - h1), (0, d_pad - d))).astype(jnp.bfloat16)
    b2 = jnp.pad(params["b2"].astype(jnp.float32), ((0, 0), (0, d_pad - d)))

    grid = (n3_pad // tile_n, f_pad // tile_k)

    out = pl.pallas_call(
        _embed_kernel,
        out_shape=jax.ShapeDtypeStruct((n3_pad, d_pad), jnp.float32),
        grid_spec=pltpu.PrefetchScalarGridSpec(
            num_scalar_prefetch=0,
            grid=grid,
            in_specs=[
                pl.BlockSpec((tile_n, tile_k), lambda i, k: (i, k)),   # x slab
                pl.BlockSpec((tile_k, h_pad), lambda i, k: (k, 0)),    # w1 slab
                pl.BlockSpec((1, h_pad), lambda i, k: (0, 0)),         # b1 (resident)
                pl.BlockSpec((h_pad, d_pad), lambda i, k: (0, 0)),     # w2 (resident)
                pl.BlockSpec((1, d_pad), lambda i, k: (0, 0)),         # b2 (resident)
                pl.BlockSpec((tile_n, d_pad), lambda i, k: (i, 0)),    # mask rows
            ],
            out_specs=pl.BlockSpec((tile_n, d_pad), lambda i, k: (i, 0)),
            scratch_shapes=[pltpu.VMEM((tile_n, h_pad), jnp.float32)],
        ),
        compiler_params=pltpu.CompilerParams(
            dimension_semantics=("parallel", "arbitrary"),
            vmem_limit_bytes=32 * 1024 * 1024,   # safe on v5e/v6e/v7x
        ),
    )(xf, w1, b1, w2, b2, mask3)

    out = out[:n3, :d]
    return out[:n], out[n:2 * n], out[2 * n:]


def make_params(key, feat_dim, hidden_dim, embed_dim, n_conditions):
    k1, k2, k3 = jax.random.split(key, 3)
    w1 = jax.random.normal(k1, (feat_dim, hidden_dim), jnp.float32) * 0.02
    b1 = jnp.zeros((1, hidden_dim), jnp.float32)
    w2 = jax.random.normal(k2, (hidden_dim, embed_dim), jnp.float32) * 0.02
    b2 = jnp.zeros((1, embed_dim), jnp.float32)
    # mask table ~ nn.Embedding(n_conditions, embed_dim); keep it positive-ish
    masks = jax.random.uniform(k3, (n_conditions, embed_dim), jnp.float32,
                               minval=0.0, maxval=1.0)
    return {"w1": w1, "b1": b1, "w2": w2, "b2": b2, "masks": masks}


if __name__ == "__main__":
    key = jax.random.PRNGKey(0)
    kx, ky, kz, kc, kp = jax.random.split(key, 5)

    N, C, H, W = 2, 4, 16, 16
    HIDDEN, D, N_COND = 32, 32, 4
    FEAT = C * H * W

    x = jax.random.normal(kx, (N, C, H, W), jnp.float32)
    y = jax.random.normal(ky, (N, C, H, W), jnp.float32)
    z = jax.random.normal(kz, (N, C, H, W), jnp.float32)
    c = jax.random.randint(kc, (N,), 0, N_COND, jnp.int32)

    params = make_params(kp, FEAT, HIDDEN, D, N_COND)

    fwd = jax.jit(lambda a, b, p, cc: cs_tripletnet_forward(a, b, p, cc, params))
    ex, ey, ez = fwd(x, y, z, c)
    jax.block_until_ready((ex, ey, ez))

    # Pure-JAX reference with the same numerics (bf16 MXU operands, f32 acc).
    w1_bf = params["w1"].astype(jnp.bfloat16)
    w2_bf = params["w2"].astype(jnp.bfloat16)

    def ref_embed(img):
        xf = img.reshape(N, -1).astype(jnp.bfloat16)
        h = jnp.maximum(
            jnp.dot(xf, w1_bf, preferred_element_type=jnp.float32) + params["b1"],
            0.0)
        e = (jnp.dot(h.astype(jnp.bfloat16), w2_bf,
                     preferred_element_type=jnp.float32) + params["b2"])
        return e * params["masks"][c]

    for got, inp in ((ex, x), (ey, y), (ez, z)):
        assert got.shape == (N, D)
        assert jnp.allclose(got, ref_embed(inp), atol=2e-3, rtol=2e-3)

    print("KERNEL_OK")
</pallas_src>

<mosaic_0001>
module attributes {stable_mosaic.version = 11 : i64} {
  func.func @_embed_kernel(%arg0: i32, %arg1: i32, %arg2: memref<8x512xbf16, #tpu.memory_space<vmem>>, %arg3: memref<512x128xbf16, #tpu.memory_space<vmem>>, %arg4: memref<1x128xf32, #tpu.memory_space<vmem>>, %arg5: memref<128x128xbf16, #tpu.memory_space<vmem>>, %arg6: memref<1x128xf32, #tpu.memory_space<vmem>>, %arg7: memref<8x128xf32, #tpu.memory_space<vmem>>, %arg8: memref<8x128xf32, #tpu.memory_space<vmem>>, %arg9: memref<8x128xf32, #tpu.memory_space<vmem>>) attributes {dimension_semantics = [#tpu.dimension_semantics<parallel>, #tpu.dimension_semantics<arbitrary>], iteration_bounds = array<i64: 1, 2>, scalar_prefetch = 0 : i64, scratch_operands = 1 : i64, tpu.core_type = #tpu.core_type<tc>, window_params = [{transform_indices = @transform_0, window_bounds = array<i64: 8, 512>}, {transform_indices = @transform_1, window_bounds = array<i64: 512, 128>}, {pipeline_mode = #tpu.pipeline_mode<synchronous>, transform_indices = @transform_2, window_bounds = array<i64: 1, 128>}, {pipeline_mode = #tpu.pipeline_mode<synchronous>, transform_indices = @transform_3, window_bounds = array<i64: 128, 128>}, {pipeline_mode = #tpu.pipeline_mode<synchronous>, transform_indices = @transform_4, window_bounds = array<i64: 1, 128>}, {transform_indices = @transform_5, window_bounds = array<i64: 8, 128>}, {transform_indices = @transform_6, window_bounds = array<i64: 8, 128>}]} {
    %c0_i32 = arith.constant 0 : i32
    %0 = arith.cmpi eq, %arg1, %c0_i32 : i32
    %1 = arith.extui %0 : i1 to i32
    %c0_i32_0 = arith.constant 0 : i32
    %2 = arith.cmpi ne, %1, %c0_i32_0 : i32
    scf.if %2 {
      %cst_9 = arith.constant 0.000000e+00 : f32
      %12 = vector.broadcast %cst_9 : f32 to vector<8x128xf32>
      %c0_10 = arith.constant 0 : index
      %c0_11 = arith.constant 0 : index
      %13 = vector.load %arg9[%c0_10, %c0_11] : memref<8x128xf32, #tpu.memory_space<vmem>>, vector<8x128xf32>
      tpu.vector_store %arg9[%c0_10, %c0_11], %12 {strides = array<i32>} : memref<8x128xf32, #tpu.memory_space<vmem>>, vector<8x128xf32>,
    } else {
    }
    %c0 = arith.constant 0 : index
    %c0_1 = arith.constant 0 : index
    %3 = vector.load %arg9[%c0, %c0_1] : memref<8x128xf32, #tpu.memory_space<vmem>>, vector<8x128xf32>
    %c0_2 = arith.constant 0 : index
    %c0_3 = arith.constant 0 : index
    %4 = vector.load %arg2[%c0_2, %c0_3] : memref<8x512xbf16, #tpu.memory_space<vmem>>, vector<8x512xbf16>
    %c0_4 = arith.constant 0 : index
    %c0_5 = arith.constant 0 : index
    %5 = vector.load %arg3[%c0_4, %c0_5] : memref<512x128xbf16, #tpu.memory_space<vmem>>, vector<512x128xbf16>
    %cst = arith.constant dense<0.000000e+00> : vector<8x128xf32>
    %6 = tpu.matmul %4, %5, %cst {dimension_numbers = #tpu.dot_dimension_numbers<[1], [0], [0], [1], [0, 0, 1, 1], [], []>} : vector<8x512xbf16>, vector<512x128xbf16>, vector<8x128xf32> -> vector<8x128xf32>
    %7 = arith.addf %3, %6 : vector<8x128xf32>
    %c0_6 = arith.constant 0 : index
    %c0_7 = arith.constant 0 : index
    %8 = vector.load %arg9[%c0_6, %c0_7] : memref<8x128xf32, #tpu.memory_space<vmem>>, vector<8x128xf32>
    tpu.vector_store %arg9[%c0_6, %c0_7], %7 {strides = array<i32>} : memref<8x128xf32, #tpu.memory_space<vmem>>, vector<8x128xf32>,
    %c1_i32 = arith.constant 1 : i32
    %9 = arith.cmpi eq, %arg1, %c1_i32 : i32
    %10 = arith.extui %9 : i1 to i32
    %c0_i32_8 = arith.constant 0 : i32
    %11 = arith.cmpi ne, %10, %c0_i32_8 : i32
    scf.if %11 {
      %c0_9 = arith.constant 0 : index
      %c0_10 = arith.constant 0 : index
      %12 = vector.load %arg9[%c0_9, %c0_10] : memref<8x128xf32, #tpu.memory_space<vmem>>, vector<8x128xf32>
      %c0_11 = arith.constant 0 : index
      %c0_12 = arith.constant 0 : index
      %13 = vector.load %arg4[%c0_11, %c0_12] : memref<1x128xf32, #tpu.memory_space<vmem>>, vector<1x128xf32>
      %14 = vector.broadcast %13 : vector<1x128xf32> to vector<8x128xf32>
      %15 = arith.addf %12, %14 : vector<8x128xf32>
      %cst_13 = arith.constant 0.000000e+00 : f32
      %16 = vector.broadcast %cst_13 : f32 to vector<8x128xf32>
      %17 = arith.maximumf %15, %16 : vector<8x128xf32>
      %18 = arith.truncf %17 : vector<8x128xf32> to vector<8x128xbf16>
      %c0_14 = arith.constant 0 : index
      %c0_15 = arith.constant 0 : index
      %19 = vector.load %arg5[%c0_14, %c0_15] : memref<128x128xbf16, #tpu.memory_space<vmem>>, vector<128x128xbf16>
      %cst_16 = arith.constant dense<0.000000e+00> : vector<8x128xf32>
      %20 = tpu.matmul %18, %19, %cst_16 {dimension_numbers = #tpu.dot_dimension_numbers<[1], [0], [0], [1], [0, 0, 1, 1], [], []>} : vector<8x128xbf16>, vector<128x128xbf16>, vector<8x128xf32> -> vector<8x128xf32>
      %c0_17 = arith.constant 0 : index
      %c0_18 = arith.constant 0 : index
      %21 = vector.load %arg6[%c0_17, %c0_18] : memref<1x128xf32, #tpu.memory_space<vmem>>, vector<1x128xf32>
      %22 = vector.broadcast %21 : vector<1x128xf32> to vector<8x128xf32>
      %23 = arith.addf %20, %22 : vector<8x128xf32>
      %c0_19 = arith.constant 0 : index
      %c0_20 = arith.constant 0 : index
      %24 = vector.load %arg7[%c0_19, %c0_20] : memref<8x128xf32, #tpu.memory_space<vmem>>, vector<8x128xf32>
      %25 = arith.mulf %23, %24 : vector<8x128xf32>
      %c0_21 = arith.constant 0 : index
      %c0_22 = arith.constant 0 : index
      %26 = vector.load %arg8[%c0_21, %c0_22] : memref<8x128xf32, #tpu.memory_space<vmem>>, vector<8x128xf32>
      tpu.vector_store %arg8[%c0_21, %c0_22], %25 {strides = array<i32>} : memref<8x128xf32, #tpu.memory_space<vmem>>, vector<8x128xf32>,
    } else {
    }
    return
  }
  func.func @transform_0(%arg0: i32, %arg1: i32) -> (i32, i32) {
    %c0_i32 = arith.constant 0 : i32
    return %arg0, %arg1 : i32, i32
  }
  func.func @transform_1(%arg0: i32, %arg1: i32) -> (i32, i32) {
    %c0_i32 = arith.constant 0 : i32
    %c0_i32_0 = arith.constant 0 : i32
    return %arg1, %c0_i32 : i32, i32
  }
  func.func @transform_2(%arg0: i32, %arg1: i32) -> (i32, i32) {
    %c0_i32 = arith.constant 0 : i32
    %c0_i32_0 = arith.constant 0 : i32
    %c0_i32_1 = arith.constant 0 : i32
    return %c0_i32, %c0_i32_0 : i32, i32
  }
  func.func @transform_3(%arg0: i32, %arg1: i32) -> (i32, i32) {
    %c0_i32 = arith.constant 0 : i32
    %c0_i32_0 = arith.constant 0 : i32
    %c0_i32_1 = arith.constant 0 : i32
    return %c0_i32, %c0_i32_0 : i32, i32
  }
  func.func @transform_4(%arg0: i32, %arg1: i32) -> (i32, i32) {
    %c0_i32 = arith.constant 0 : i32
    %c0_i32_0 = arith.constant 0 : i32
    %c0_i32_1 = arith.constant 0 : i32
    return %c0_i32, %c0_i32_0 : i32, i32
  }
  func.func @transform_5(%arg0: i32, %arg1: i32) -> (i32, i32) {
    %c0_i32 = arith.constant 0 : i32
    %c0_i32_0 = arith.constant 0 : i32
    return %arg0, %c0_i32 : i32, i32
  }
  func.func @transform_6(%arg0: i32, %arg1: i32) -> (i32, i32) {
    %c0_i32 = arith.constant 0 : i32
    %c0_i32_0 = arith.constant 0 : i32
    return %arg0, %c0_i32 : i32, i32
  }
}

</mosaic_0001>

<llo_original>
// kernel: tile.8
$region0: #{tile.8}
  #allocation0 [shape = 's32[1]{0}', space=sflag, size = 0x4, scoped, tag = 'scoped memory for tile.8']
  %s0 = inlined_call_operand.vmem [shape: s32[2], index: 0, kind: input, shape index: {}]
  %s1 = inlined_call_operand.vmem [shape: s32[3,2], index: 1, kind: output, shape index: {}]
  // Predicated region
  $region2: #{tile.8} parent=0 // pred_check
    _
  $region3: #{tile.8} parent=0 // pred_check_branch
    %3 = sbr.rel (0) target = $region5
  $region4: #{tile.8} parent=0 // pred_region
    _
  $region5: #{tile.8} parent=0 // pred_fallthru
    _
  %v4 = vld [vmem:[%s0] ss:$0 sm:$0xff]
  %5 = vst [vmem:[%s1] sm:$0xf] %v4

// kernel: _lambda_.1
$region0: #{_lambda_.1}
  #allocation0 [shape = 'u32[]', space=smem, size = 0x4, offset = 0x4, fixed_abs, tag = 'smem constant byte address 0x4 - core index']
  #allocation1 [shape = 'u32[144,128]{1,0:T(1,128)}', space=vmem, size = 0x12000, scoped, tag = 'internal scratch']
  #allocation2 [shape = 'f32[8,128]{1,0:T(8,128)}', space=vmem, size = 0x1000, scoped, tag = 'scratch operand']
  %s0 = inlined_call_operand.vmem [shape: bf16[8,1024], index: 0, kind: input, shape index: {}]
  %s1 = inlined_call_operand.vmem [shape: bf16[1024,128], index: 1, kind: input, shape index: {}]
  %s2 = inlined_call_operand.vmem [shape: f32[1,128], index: 2, kind: input, shape index: {}, may-alias: {2,4}]
  %s3 = inlined_call_operand.vmem [shape: bf16[128,128], index: 3, kind: input, shape index: {}]
  %s4 = inlined_call_operand.vmem [shape: f32[1,128], index: 4, kind: input, shape index: {}, may-alias: {2,4}]
  %s5 = inlined_call_operand.vmem [shape: f32[8,128], index: 5, kind: input, shape index: {}]
  %s6 = inlined_call_operand.vmem [shape: f32[8,128], index: 6, kind: output, shape index: {}]
  %s7 = sld [smem:[#allocation0]]
  $region65: #{_lambda_.1} parent=0
    _
  %s9 = ssub.s32 1, %s7
  %s10 = scalar_select 0, %s9, %s7
  loop: start=0, step=1, limit=4
  $region2: #{_lambda_.1} parent=0 // loop_pre_header
    _
  $region3: #{_lambda_.1} parent=0 // loop_header
    %s12 = sphi 0, %s16
    %p13 = scmp.ge.s32.totalorder %s12, 4
    %s19 = sphi 0, %s31
    %s20 = sphi 0, %s27
    %s21 = sphi 0, %s19
    %s22 = sphi 0, %s20
    %s23 = sphi 0, %s21
    %s24 = sphi 0, %s22
    %s36 = sphi 0, %s38
    %s39 = sphi 0, %s36
    %s40 = sphi 0, %s39
    %s56 = sphi 0, %s40
    %s62 = sphi 0, %s64
    %s65 = sphi 0, %s62
    %s66 = sphi 0, %s65
    %s82 = sphi 0, %s66
    %s86 = sphi 0, %s86
    %s88 = sphi 0, %s86
    %s89 = sphi 0, %s88
    %s103 = sphi 0, %s89
    %s107 = sphi 0, %s107
    %s109 = sphi 0, %s107
    %s110 = sphi 0, %s109
    %s124 = sphi 0, %s110
    %s128 = sphi 0, %s128
    %s130 = sphi 0, %s128
    %s131 = sphi 0, %s130
    %s145 = sphi 0, %s131
    %s151 = sphi 0, %s153
    %s154 = sphi 0, %s151
    %s155 = sphi 0, %s154
    %s171 = sphi 0, %s155
    %s177 = sphi 0, %s179
    %s180 = sphi 0, %s177
    %s181 = sphi 0, %s180
    %s197 = sphi 0, %s181
  $region4: #{_lambda_.1} parent=0 // loop_header_branch
    %15 = sbr.rel (%p13) target = $region8
  $region5: #{_lambda_.1} parent=0 // loop_body
    %s17 = ssub.s32 %s12, 1
    %s18 = ssub.s32 %s12, 2
    %s25 = sadd.s32 1, %s20
    %p26 = scmp.ge.s32.totalorder %s25, 2
    %s27 = scalar_select %p26, 0, %s25
    %s28 = sadd.s32 1, %s19
    %s29 = scalar_select %p26, %s28, %s19
    %p30 = scmp.ge.s32.totalorder %s29, 1
    %s31 = scalar_select %p30, 0, %s29
    %s32 = ssub.s32 %s19, %s31
    %s33 = ssub.s32 %s20, %s27
    %s34 = sor.u32 %s32, %s33
    %p35 = scmp.eq.s32.totalorder %s34, 0
    %s37 = sadd.s32 %s36, 1
    %s38 = scalar_select %p35, %s36, %s37
    %p41 = pneg %p35
    %p42 = scmp.eq.s32.totalorder %s12, 1
    %p43 = por %p41, %p42
    %p44 = scmp.ne.s32.totalorder %s36, %s39
    %p45 = scmp.eq.s32.totalorder %s12, 0
    %p46 = por %p44, %p45
    %p47 = scmp.ne.s32.totalorder %s36, %s39
    %p48 = scmp.eq.s32.totalorder %s17, 1
    %p49 = por %p47, %p48
    %p50 = scmp.ne.s32.totalorder %s39, %s40
    %p51 = scmp.eq.s32.totalorder %s17, 0
    %p52 = por %p50, %p51
    %p53 = scmp.ne.s32.totalorder %s39, %s40
    %p54 = scmp.eq.s32.totalorder %s18, 1
    %p55 = por %p53, %p54
    %p57 = scmp.ne.s32.totalorder %s40, %s56
    %p58 = scmp.eq.s32.totalorder %s18, 0
    %p59 = por %p57, %p58
    %s60 = ssub.s32 %s20, %s27
    %p61 = scmp.eq.s32.totalorder %s60, 0
    %s63 = sadd.s32 %s62, 1
    %s64 = scalar_select %p61, %s62, %s63
    %p67 = pneg %p61
    %p68 = scmp.eq.s32.totalorder %s12, 1
    %p69 = por %p67, %p68
    %p70 = scmp.ne.s32.totalorder %s62, %s65
    %p71 = scmp.eq.s32.totalorder %s12, 0
    %p72 = por %p70, %p71
    %p73 = scmp.ne.s32.totalorder %s62, %s65
    %p74 = scmp.eq.s32.totalorder %s17, 1
    %p75 = por %p73, %p74
    %p76 = scmp.ne.s32.totalorder %s65, %s66
    %p77 = scmp.eq.s32.totalorder %s17, 0
    %p78 = por %p76, %p77
    %p79 = scmp.ne.s32.totalorder %s65, %s66
    %p80 = scmp.eq.s32.totalorder %s18, 1
    %p81 = por %p79, %p80
    %p83 = scmp.ne.s32.totalorder %s66, %s82
    %p84 = scmp.eq.s32.totalorder %s18, 0
    %p85 = por %p83, %p84
    %s87 = sadd.s32 %s86, 1
    %p90 = scmp.eq.s32.totalorder %s12, 1
    %p91 = scmp.ne.s32.totalorder %s86, %s88
    %p92 = scmp.eq.s32.totalorder %s12, 0
    %p93 = por %p91, %p92
    %p94 = scmp.ne.s32.totalorder %s86, %s88
    %p95 = scmp.eq.s32.totalorder %s17, 1
    %p96 = por %p94, %p95
    %p97 = scmp.ne.s32.totalorder %s88, %s89
    %p98 = scmp.eq.s32.totalorder %s17, 0
    %p99 = por %p97, %p98
    %p100 = scmp.ne.s32.totalorder %s88, %s89
    %p101 = scmp.eq.s32.totalorder %s18, 1
    %p102 = por %p100, %p101
    %p104 = scmp.ne.s32.totalorder %s89, %s103
    %p105 = scmp.eq.s32.totalorder %s18, 0
    %p106 = por %p104, %p105
    %s108 = sadd.s32 %s107, 1
    %p111 = scmp.eq.s32.totalorder %s12, 1
    %p112 = scmp.ne.s32.totalorder %s107, %s109
    %p113 = scmp.eq.s32.totalorder %s12, 0
    %p114 = por %p112, %p113
    %p115 = scmp.ne.s32.totalorder %s107, %s109
    %p116 = scmp.eq.s32.totalorder %s17, 1
    %p117 = por %p115, %p116
    %p118 = scmp.ne.s32.totalorder %s109, %s110
    %p119 = scmp.eq.s32.totalorder %s17, 0
    %p120 = por %p118, %p119
    %p121 = scmp.ne.s32.totalorder %s109, %s110
    %p122 = scmp.eq.s32.totalorder %s18, 1
    %p123 = por %p121, %p122
    %p125 = scmp.ne.s32.totalorder %s110, %s124
    %p126 = scmp.eq.s32.totalorder %s18, 0
    %p127 = por %p125, %p126
    %s129 = sadd.s32 %s128, 1
    %p132 = scmp.eq.s32.totalorder %s12, 1
    %p133 = scmp.ne.s32.totalorder %s128, %s130
    %p134 = scmp.eq.s32.totalorder %s12, 0
    %p135 = por %p133, %p134
    %p136 = scmp.ne.s32.totalorder %s128, %s130
    %p137 = scmp.eq.s32.totalorder %s17, 1
    %p138 = por %p136, %p137
    %p139 = scmp.ne.s32.totalorder %s130, %s131
    %p140 = scmp.eq.s32.totalorder %s17, 0
    %p141 = por %p139, %p140
    %p142 = scmp.ne.s32.totalorder %s130, %s131
    %p143 = scmp.eq.s32.totalorder %s18, 1
    %p144 = por %p142, %p143
    %p146 = scmp.ne.s32.totalorder %s131, %s145
    %p147 = scmp.eq.s32.totalorder %s18, 0
    %p148 = por %p146, %p147
    %s149 = ssub.s32 %s19, %s31
    %p150 = scmp.eq.s32.totalorder %s149, 0
    %s152 = sadd.s32 %s151, 1
    %s153 = scalar_select %p150, %s151, %s152
    %p156 = pneg %p150
    %p157 = scmp.eq.s32.totalorder %s12, 1
    %p158 = por %p156, %p157
    %p159 = scmp.ne.s32.totalorder %s151, %s154
    %p160 = scmp.eq.s32.totalorder %s12, 0
    %p161 = por %p159, %p160
    %p162 = scmp.ne.s32.totalorder %s151, %s154
    %p163 = scmp.eq.s32.totalorder %s17, 1
    %p164 = por %p162, %p163
    %p165 = scmp.ne.s32.totalorder %s154, %s155
    %p166 = scmp.eq.s32.totalorder %s17, 0
    %p167 = por %p165, %p166
    %p168 = scmp.ne.s32.totalorder %s154, %s155
    %p169 = scmp.eq.s32.totalorder %s18, 1
    %p170 = por %p168, %p169
    %p172 = scmp.ne.s32.totalorder %s155, %s171
    %p173 = scmp.eq.s32.totalorder %s18, 0
    %p174 = por %p172, %p173
    %s175 = ssub.s32 %s19, %s31
    %p176 = scmp.eq.s32.totalorder %s175, 0
    %s178 = sadd.s32 %s177, 1
    %s179 = scalar_select %p176, %s177, %s178
    %p182 = pneg %p176
    %p183 = scmp.eq.s32.totalorder %s12, 1
    %p184 = por %p182, %p183
    %p185 = scmp.ne.s32.totalorder %s177, %s180
    %p186 = scmp.eq.s32.totalorder %s12, 0
    %p187 = por %p185, %p186
    %p188 = scmp.ne.s32.totalorder %s177, %s180
    %p189 = scmp.eq.s32.totalorder %s17, 1
    %p190 = por %p188, %p189
    %p191 = scmp.ne.s32.totalorder %s180, %s181
    %p192 = scmp.eq.s32.totalorder %s17, 0
    %p193 = por %p191, %p192
    %p194 = scmp.ne.s32.totalorder %s180, %s181
    %p195 = scmp.eq.s32.totalorder %s18, 1
    %p196 = por %p194, %p195
    %p198 = scmp.ne.s32.totalorder %s181, %s197
    %p199 = scmp.eq.s32.totalorder %s18, 0
    %p200 = por %p198, %p199
    %p201 = scmp.le.s32.totalorder 1, %s12
    %p202 = scmp.lt.s32.totalorder %s12, 3
    %p203 = pnand %p201, %p202
    %p204 = pneg %p203
    // Predicated region
    $region9: #{_lambda_.1} parent=5 // pred_check
      _
    $region10: #{_lambda_.1} parent=5 // pred_check_branch
      %206 = sbr.rel (%p203) target = $region12
    $region11: #{_lambda_.1} parent=5 // pred_region
      %s207 = ssub.s32 %s12, 1
      // Predicated region
      $region13: #{_lambda_.1} parent=11 // pred_check
        %p208 = pneg %p99
      $region14: #{_lambda_.1} parent=11 // pred_check_branch
        %210 = sbr.rel (%p208) target = $region16
      $region15: #{_lambda_.1} parent=11 // pred_region
        _
      $region16: #{_lambda_.1} parent=11 // pred_fallthru
        _
      // Predicated region
      $region17: #{_lambda_.1} parent=11 // pred_check
        %p211 = pneg %p120
      $region18: #{_lambda_.1} parent=11 // pred_check_branch
        %213 = sbr.rel (%p211) target = $region20
      $region19: #{_lambda_.1} parent=11 // pred_region
        _
      $region20: #{_lambda_.1} parent=11 // pred_fallthru
        _
      // Predicated region
      $region21: #{_lambda_.1} parent=11 // pred_check
        %p214 = pneg %p141
      $region22: #{_lambda_.1} parent=11 // pred_check_branch
        %216 = sbr.rel (%p214) target = $region24
      $region23: #{_lambda_.1} parent=11 // pred_region
        _
      $region24: #{_lambda_.1} parent=11 // pred_fallthru
        _
      // Predicated region
      $region25: #{_lambda_.1} parent=11 // pred_check
        %p217 = pneg %p167
      $region26: #{_lambda_.1} parent=11 // pred_check_branch
        %219 = sbr.rel (%p217) target = $region28
      $region27: #{_lambda_.1} parent=11 // pred_region
        %p220 = scmp.lt.s32.totalorder %s21, 0
        %s221 = scalar_select %p220, %s21, 0
        %s222 = smul.addr %s221, 8
        %s223 = scalar_lea.vmem %s5, %s222
      $region28: #{_lambda_.1} parent=11 // pred_fallthru
        _
    $region12: #{_lambda_.1} parent=5 // pred_fallthru
      _
    %p224 = scmp.lt.s32.totalorder %s12, 2
    // Predicated region
    $region29: #{_lambda_.1} parent=5 // pred_check
      %p225 = pneg %p224
    $region30: #{_lambda_.1} parent=5 // pred_check_branch
      %227 = sbr.rel (%p225) target = $region32
    $region31: #{_lambda_.1} parent=5 // pred_region
      // Predicated region
      $region33: #{_lambda_.1} parent=31 // pred_check
        %p228 = pneg %p46
      $region34: #{_lambda_.1} parent=31 // pred_check_branch
        %230 = sbr.rel (%p228) target = $region36
      $region35: #{_lambda_.1} parent=31 // pred_region
        %s231 = smul.u32 4, %s20
        %p232 = scmp.lt.s32.totalorder %s19, 0
        %s233 = scalar_select %p232, %s19, 0
        %p234 = scmp.lt.s32.totalorder %s231, 7
        %s235 = scalar_select %p234, %s231, 7
        %s236 = smul.addr %s233, 8
        %s237 = sadd.s32 %s235, %s236
        %s238 = smul.addr %s237, 4
        %s239 = scalar_lea.vmem %s0, %s238
        %s240 = smul.u32 4, %s20
      $region36: #{_lambda_.1} parent=31 // pred_fallthru
        _
      // Predicated region
      $region37: #{_lambda_.1} parent=31 // pred_check
        %p241 = pneg %p72
      $region38: #{_lambda_.1} parent=31 // pred_check_branch
        %243 = sbr.rel (%p241) target = $region40
      $region39: #{_lambda_.1} parent=31 // pred_region
        %s244 = smul.u32 64, %s20
        %p245 = scmp.lt.s32.totalorder %s244, 127
        %s246 = scalar_select %p245, %s244, 127
        %s247 = smul.addr %s246, 4
        %s248 = scalar_lea.vmem %s1, %s247
        %s249 = smul.u32 64, %s20
      $region40: #{_lambda_.1} parent=31 // pred_fallthru
        _
    $region32: #{_lambda_.1} parent=5 // pred_fallthru
      _
    %p250 = scmp.le.s32.totalorder 1, %s12
    %p251 = scmp.lt.s32.totalorder %s12, 3
    %p252 = pnand %p250, %p251
    %p253 = pneg %p252
    // Predicated region
    $region41: #{_lambda_.1} parent=5 // pred_check
      _
    $region42: #{_lambda_.1} parent=5 // pred_check_branch
      %255 = sbr.rel (%p252) target = $region44
    $region43: #{_lambda_.1} parent=5 // pred_region
      %s256 = ssub.s32 %s12, 1
      %s257 = smul.u32 4, %s22
      %p258 = scmp.lt.s32.totalorder %s21, 0
      %s259 = scalar_select %p258, %s21, 0
      %p260 = scmp.lt.s32.totalorder %s257, 7
      %s261 = scalar_select %p260, %s257, 7
      %s262 = smul.addr %s259, 8
      %s263 = sadd.s32 %s261, %s262
      %s264 = smul.addr %s263, 4
      %s265 = scalar_lea.vmem %s0, %s264
      %p266 = pneg %p52
      %p267 = pneg %p49
      %s268 = smul.u32 64, %s22
      %p269 = scmp.lt.s32.totalorder %s268, 127
      %s270 = scalar_select %p269, %s268, 127
      %s271 = smul.addr %s270, 4
      %s272 = scalar_lea.vmem %s1, %s271
      %p273 = pneg %p78
      %p274 = pneg %p75
      %p275 = pneg %p99
      %p276 = pneg %p96
      %p277 = pneg %p120
      %p278 = pneg %p117
      %p279 = pneg %p141
      %p280 = pneg %p138
      %p281 = scmp.lt.s32.totalorder %s21, 0
      %s282 = scalar_select %p281, %s21, 0
      %s283 = smul.addr %s282, 8
      %s284 = scalar_lea.vmem %s5, %s283
      %p285 = pneg %p167
      %p286 = pneg %p164
      %p287 = pneg %p193
      %p288 = pneg %p190
      %p289 = scmp.lt.s32.totalorder %s21, 0
      %s290 = scalar_select %p289, %s21, 0
      %s291 = smul.addr %s290, 8
      %s292 = scalar_lea.vmem %s6, %s291
      %s293 = smul.u32 4, %s22
      %p294 = scmp.lt.s32.totalorder %s21, 0
      %s295 = scalar_select %p294, %s21, 0
      %p296 = scmp.lt.s32.totalorder %s293, 7
      %s297 = scalar_select %p296, %s293, 7
      %s298 = smul.addr %s295, 8
      %s299 = sadd.s32 %s297, %s298
      %s300 = smul.addr %s299, 4
      %s301 = scalar_lea.vmem %s0, %s300
      %s302 = smul.u32 4, %s22
      %s303 = smul.u32 64, %s22
      %p304 = scmp.lt.s32.totalorder %s303, 127
      %s305 = scalar_select %p304, %s303, 127
      %s306 = smul.addr %s305, 4
      %s307 = scalar_lea.vmem %s1, %s306
      %s308 = smul.u32 64, %s22
      %p309 = scmp.lt.s32.totalorder %s21, 0
      %s310 = scalar_select %p309, %s21, 0
      %s311 = smul.addr %s310, 8
      %s312 = scalar_lea.vmem %s5, %s311
      %p313 = scmp.lt.s32.totalorder %s21, 0
      %s314 = scalar_select %p313, %s21, 0
      %s315 = smul.addr %s314, 8
      %s316 = scalar_lea.vmem %s6, %s315
      %p318 = scmp.eq.s32.totalorder %s22, 0
      // Predicated region
      $region45: #{_lambda_.1} parent=43 // pred_check
        %p319 = pneg %p318
      $region46: #{_lambda_.1} parent=43 // pred_check_branch
        %321 = sbr.rel (%p319) target = $region48
      $region47: #{_lambda_.1} parent=43 // pred_region
        %322 = vst [vmem:[#allocation2] sm:$0xff] 0.0
      $region48: #{_lambda_.1} parent=43 // pred_fallthru
        _
      %v323 = vld [vmem:[#allocation2] sm:$0xff]
      %v324 = vld [vmem:[%s301] sm:$0xff]
      %v325 = vld [vmem:[%s301 + $0x8] sm:$0xff]
      %v326 = vld [vmem:[%s307] sm:$0xf]
      %v327 = vld [vmem:[%s307 + $0x4] sm:$0xf]
      %v328 = vld [vmem:[%s307 + $0x8] sm:$0xf]
      %v329 = vld [vmem:[%s307 + $0xc] sm:$0xf]
      %v330 = vld [vmem:[%s307 + $0x10] sm:$0xf]
      %v331 = vld [vmem:[%s307 + $0x14] sm:$0xf]
      %v332 = vld [vmem:[%s307 + $0x18] sm:$0xf]
      %v333 = vld [vmem:[%s307 + $0x1c] sm:$0xf]
      %v334 = vld [vmem:[%s307 + $0x20] sm:$0xf]
      %v335 = vld [vmem:[%s307 + $0x24] sm:$0xf]
      %v336 = vld [vmem:[%s307 + $0x28] sm:$0xf]
      %v337 = vld [vmem:[%s307 + $0x2c] sm:$0xf]
      %v338 = vld [vmem:[%s307 + $0x30] sm:$0xf]
      %v339 = vld [vmem:[%s307 + $0x34] sm:$0xf]
      %v340 = vld [vmem:[%s307 + $0x38] sm:$0xf]
      %v341 = vld [vmem:[%s307 + $0x3c] sm:$0xf]
      %v342 = vld [vmem:[%s307 + $0x40] sm:$0xf]
      %v343 = vld [vmem:[%s307 + $0x44] sm:$0xf]
      %v344 = vld [vmem:[%s307 + $0x48] sm:$0xf]
      %v345 = vld [vmem:[%s307 + $0x4c] sm:$0xf]
      %v346 = vld [vmem:[%s307 + $0x50] sm:$0xf]
      %v347 = vld [vmem:[%s307 + $0x54] sm:$0xf]
      %v348 = vld [vmem:[%s307 + $0x58] sm:$0xf]
      %v349 = vld [vmem:[%s307 + $0x5c] sm:$0xf]
      %v350 = vld [vmem:[%s307 + $0x60] sm:$0xf]
      %v351 = vld [vmem:[%s307 + $0x64] sm:$0xf]
      %v352 = vld [vmem:[%s307 + $0x68] sm:$0xf]
      %v353 = vld [vmem:[%s307 + $0x6c] sm:$0xf]
      %v354 = vld [vmem:[%s307 + $0x70] sm:$0xf]
      %v355 = vld [vmem:[%s307 + $0x74] sm:$0xf]
      %v356 = vld [vmem:[%s307 + $0x78] sm:$0xf]
      %v357 = vld [vmem:[%s307 + $0x7c] sm:$0xf]
      %v358 = vld [vmem:[%s307 + $0x80] sm:$0xf]
      %v359 = vld [vmem:[%s307 + $0x84] sm:$0xf]
      %v360 = vld [vmem:[%s307 + $0x88] sm:$0xf]
      %v361 = vld [vmem:[%s307 + $0x8c] sm:$0xf]
      %v362 = vld [vmem:[%s307 + $0x90] sm:$0xf]
      %v363 = vld [vmem:[%s307 + $0x94] sm:$0xf]
      %v364 = vld [vmem:[%s307 + $0x98] sm:$0xf]
      %v365 = vld [vmem:[%s307 + $0x9c] sm:$0xf]
      %v366 = vld [vmem:[%s307 + $0xa0] sm:$0xf]
      %v367 = vld [vmem:[%s307 + $0xa4] sm:$0xf]
      %v368 = vld [vmem:[%s307 + $0xa8] sm:$0xf]
      %v369 = vld [vmem:[%s307 + $0xac] sm:$0xf]
      %v370 = vld [vmem:[%s307 + $0xb0] sm:$0xf]
      %v371 = vld [vmem:[%s307 + $0xb4] sm:$0xf]
      %v372 = vld [vmem:[%s307 + $0xb8] sm:$0xf]
      %v373 = vld [vmem:[%s307 + $0xbc] sm:$0xf]
      %v374 = vld [vmem:[%s307 + $0xc0] sm:$0xf]
      %v375 = vld [vmem:[%s307 + $0xc4] sm:$0xf]
      %v376 = vld [vmem:[%s307 + $0xc8] sm:$0xf]
      %v377 = vld [vmem:[%s307 + $0xcc] sm:$0xf]
      %v378 = vld [vmem:[%s307 + $0xd0] sm:$0xf]
      %v379 = vld [vmem:[%s307 + $0xd4] sm:$0xf]
      %v380 = vld [vmem:[%s307 + $0xd8] sm:$0xf]
      %v381 = vld [vmem:[%s307 + $0xdc] sm:$0xf]
      %v382 = vld [vmem:[%s307 + $0xe0] sm:$0xf]
      %v383 = vld [vmem:[%s307 + $0xe4] sm:$0xf]
      %v384 = vld [vmem:[%s307 + $0xe8] sm:$0xf]
      %v385 = vld [vmem:[%s307 + $0xec] sm:$0xf]
      %v386 = vld [vmem:[%s307 + $0xf0] sm:$0xf]
      %v387 = vld [vmem:[%s307 + $0xf4] sm:$0xf]
      %v388 = vld [vmem:[%s307 + $0xf8] sm:$0xf]
      %v389 = vld [vmem:[%s307 + $0xfc] sm:$0xf]
      %v392 = vunpack.c.l.b16 %v324
      %v393 = vunpack.c.h.b16 %v324
      %v394 = vunpack.c.l.b16 %v325
      %v395 = vunpack.c.h.b16 %v325
      %v396 = vpack.c.b16 %v392, %v392
      %v397 = vpack.c.b16 %v393, %v393
      %v398 = vpack.c.b16 %v394, %v394
      %v399 = vpack.c.b16 %v395, %v395
      %v468 = vunpack.c.l.b16 %v326
      %v469 = vunpack.c.l.b16 %v327
      %v470 = vunpack.c.l.b16 %v328
      %v471 = vunpack.c.l.b16 %v329
      %v472 = vunpack.c.l.b16 %v330
      %v473 = vunpack.c.l.b16 %v331
      %v474 = vunpack.c.l.b16 %v332
      %v475 = vunpack.c.l.b16 %v333
      %v476 = vunpack.c.l.b16 %v334
      %v477 = vunpack.c.l.b16 %v335
      %v478 = vunpack.c.l.b16 %v336
      %v479 = vunpack.c.l.b16 %v337
      %v480 = vunpack.c.l.b16 %v338
      %v481 = vunpack.c.l.b16 %v339
      %v482 = vunpack.c.l.b16 %v340
      %v483 = vunpack.c.l.b16 %v341
      %v484 = vunpack.c.l.b16 %v342
      %v485 = vunpack.c.l.b16 %v343
      %v486 = vunpack.c.l.b16 %v344
      %v487 = vunpack.c.l.b16 %v345
      %v488 = vunpack.c.l.b16 %v346
      %v489 = vunpack.c.l.b16 %v347
      %v490 = vunpack.c.l.b16 %v348
      %v491 = vunpack.c.l.b16 %v349
      %v492 = vunpack.c.l.b16 %v350
      %v493 = vunpack.c.l.b16 %v351
      %v494 = vunpack.c.l.b16 %v352
      %v495 = vunpack.c.l.b16 %v353
      %v496 = vunpack.c.l.b16 %v354
      %v497 = vunpack.c.l.b16 %v355
      %v498 = vunpack.c.l.b16 %v356
      %v499 = vunpack.c.l.b16 %v357
      %v500 = vunpack.c.l.b16 %v358
      %v501 = vunpack.c.l.b16 %v359
      %v502 = vunpack.c.l.b16 %v360
      %v503 = vunpack.c.l.b16 %v361
      %v504 = vunpack.c.l.b16 %v362
      %v505 = vunpack.c.l.b16 %v363
      %v506 = vunpack.c.l.b16 %v364
      %v507 = vunpack.c.l.b16 %v365
      %v508 = vunpack.c.l.b16 %v366
      %v509 = vunpack.c.l.b16 %v367
      %v510 = vunpack.c.l.b16 %v368
      %v511 = vunpack.c.l.b16 %v369
      %v512 = vunpack.c.l.b16 %v370
      %v513 = vunpack.c.l.b16 %v371
      %v514 = vunpack.c.l.b16 %v372
      %v515 = vunpack.c.l.b16 %v373
      %v516 = vunpack.c.l.b16 %v374
      %v517 = vunpack.c.l.b16 %v375
      %v518 = vunpack.c.l.b16 %v376
      %v519 = vunpack.c.l.b16 %v377
      %v520 = vunpack.c.l.b16 %v378
      %v521 = vunpack.c.l.b16 %v379
      %v522 = vunpack.c.l.b16 %v380
      %v523 = vunpack.c.l.b16 %v381
      %v524 = vunpack.c.l.b16 %v382
      %v525 = vunpack.c.l.b16 %v383
      %v526 = vunpack.c.l.b16 %v384
      %v527 = vunpack.c.l.b16 %v385
      %v528 = vunpack.c.l.b16 %v386
      %v529 = vunpack.c.l.b16 %v387
      %v530 = vunpack.c.l.b16 %v388
      %v531 = vunpack.c.l.b16 %v389
      %v532 = vpack.c.b16 %v469, %v468
      %v533 = vpack.c.b16 %v471, %v470
      %v534 = vpack.c.b16 %v473, %v472
      %v535 = vpack.c.b16 %v475, %v474
      %v536 = vpack.c.b16 %v477, %v476
      %v537 = vpack.c.b16 %v479, %v478
      %v538 = vpack.c.b16 %v481, %v480
      %v539 = vpack.c.b16 %v483, %v482
      %v540 = vpack.c.b16 %v485, %v484
      %v541 = vpack.c.b16 %v487, %v486
      %v542 = vpack.c.b16 %v489, %v488
      %v543 = vpack.c.b16 %v491, %v490
      %v544 = vpack.c.b16 %v493, %v492
      %v545 = vpack.c.b16 %v495, %v494
      %v546 = vpack.c.b16 %v497, %v496
      %v547 = vpack.c.b16 %v499, %v498
      %v548 = vpack.c.b16 %v501, %v500
      %v549 = vpack.c.b16 %v503, %v502
      %v550 = vpack.c.b16 %v505, %v504
      %v551 = vpack.c.b16 %v507, %v506
      %v552 = vpack.c.b16 %v509, %v508
      %v553 = vpack.c.b16 %v511, %v510
      %v554 = vpack.c.b16 %v513, %v512
      %v555 = vpack.c.b16 %v515, %v514
      %v556 = vpack.c.b16 %v517, %v516
      %v557 = vpack.c.b16 %v519, %v518
      %v558 = vpack.c.b16 %v521, %v520
      %v559 = vpack.c.b16 %v523, %v522
      %v560 = vpack.c.b16 %v525, %v524
      %v561 = vpack.c.b16 %v527, %v526
      %v562 = vpack.c.b16 %v529, %v528
      %v563 = vpack.c.b16 %v531, %v530
      %596 = vmatprep.subr.bf16.mxu0 0
      %597 = vmatpush1.bf16.msra.mxu0 %v532
      %598 = vmatprep.subr.bf16.mxu0 0
      %599 = vmatpush1.bf16.msra.mxu0 %v533
      %600 = vmatprep.subr.bf16.mxu0 0
      %601 = vmatpush1.bf16.msra.mxu0 %v534
      %602 = vmatprep.subr.bf16.mxu0 0
      %603 = vmatpush1.bf16.msra.mxu0 %v535
      %604 = vmatprep.subr.bf16.mxu0 0
      %605 = vmatpush1.bf16.msra.mxu0 %v536
      %606 = vmatprep.subr.bf16.mxu0 0
      %607 = vmatpush1.bf16.msra.mxu0 %v537
      %608 = vmatprep.subr.bf16.mxu0 0
      %609 = vmatpush1.bf16.msra.mxu0 %v538
      %610 = vmatprep.subr.bf16.mxu0 0
      %611 = vmatpush1.bf16.msra.mxu0 %v539
      %612 = vmatprep.subr.bf16.mxu0 0
      %613 = vmatpush1.bf16.msra.mxu0 %v540
      %614 = vmatprep.subr.bf16.mxu0 0
      %615 = vmatpush1.bf16.msra.mxu0 %v541
      %616 = vmatprep.subr.bf16.mxu0 0
      %617 = vmatpush1.bf16.msra.mxu0 %v542
      %618 = vmatprep.subr.bf16.mxu0 0
      %619 = vmatpush1.bf16.msra.mxu0 %v543
      %620 = vmatprep.subr.bf16.mxu0 0
      %621 = vmatpush1.bf16.msra.mxu0 %v544
      %622 = vmatprep.subr.bf16.mxu0 0
      %623 = vmatpush1.bf16.msra.mxu0 %v545
      %624 = vmatprep.subr.bf16.mxu0 0
      %625 = vmatpush1.bf16.msra.mxu0 %v546
      %626 = vmatprep.subr.bf16.mxu0 0
      %627 = vmatpush1.bf16.msra.mxu0 %v547
      %628 = vmatprep.mubr.bf16.mxu0 %v397
      %629 = vmatmul.mubr.bf16.gmra.mrb[0].mxu0 %v396
      %v630 = vpop.f32.mrb[0].mxu0
      %v631 = vadd.f32 0.0, %v630
      %v632 = vpop.f32.mrb[0].mxu0
      %v633 = vpop.f32.mrb[0].mxu0
      %v634 = vpop.f32.mrb[0].mxu0
      %635 = vdwg.mxu0
      %636 = vmatprep.subr.bf16.mxu0 0
      %637 = vmatpush1.bf16.msra.mxu0 %v548
      %638 = vmatprep.subr.bf16.mxu0 0
      %639 = vmatpush1.bf16.msra.mxu0 %v549
      %640 = vmatprep.subr.bf16.mxu0 0
      %641 = vmatpush1.bf16.msra.mxu0 %v550
      %642 = vmatprep.subr.bf16.mxu0 0
      %643 = vmatpush1.bf16.msra.mxu0 %v551
      %644 = vmatprep.subr.bf16.mxu0 0
      %645 = vmatpush1.bf16.msra.mxu0 %v552
      %646 = vmatprep.subr.bf16.mxu0 0
      %647 = vmatpush1.bf16.msra.mxu0 %v553
      %648 = vmatprep.subr.bf16.mxu0 0
      %649 = vmatpush1.bf16.msra.mxu0 %v554
      %650 = vmatprep.subr.bf16.mxu0 0
      %651 = vmatpush1.bf16.msra.mxu0 %v555
      %652 = vmatprep.subr.bf16.mxu0 0
      %653 = vmatpush1.bf16.msra.mxu0 %v556
      %654 = vmatprep.subr.bf16.mxu0 0
      %655 = vmatpush1.bf16.msra.mxu0 %v557
      %656 = vmatprep.subr.bf16.mxu0 0
      %657 = vmatpush1.bf16.msra.mxu0 %v558
      %658 = vmatprep.subr.bf16.mxu0 0
      %659 = vmatpush1.bf16.msra.mxu0 %v559
      %660 = vmatprep.subr.bf16.mxu0 0
      %661 = vmatpush1.bf16.msra.mxu0 %v560
      %662 = vmatprep.subr.bf16.mxu0 0
      %663 = vmatpush1.bf16.msra.mxu0 %v561
      %664 = vmatprep.subr.bf16.mxu0 0
      %665 = vmatpush1.bf16.msra.mxu0 %v562
      %666 = vmatprep.subr.bf16.mxu0 0
      %667 = vmatpush1.bf16.msra.mxu0 %v563
      %668 = vmatprep.mubr.bf16.mxu0 %v399
      %669 = vmatmul.mubr.bf16.gmra.mrb[0].mxu0 %v398
      %v670 = vpop.f32.mrb[0].mxu0
      %v671 = vadd.f32 %v631, %v670
      %v672 = vpop.f32.mrb[0].mxu0
      %v673 = vpop.f32.mrb[0].mxu0
      %v674 = vpop.f32.mrb[0].mxu0
      %675 = vdwg.mxu0
      %v676 = vadd.f32 %v323, %v671
      %677 = vst [vmem:[#allocation2] sm:$0xff] %v676
      %p678 = scmp.eq.s32.totalorder %s22, 1
      // Predicated region
      $region49: #{_lambda_.1} parent=43 // pred_check
        %p679 = pneg %p678
      $region50: #{_lambda_.1} parent=43 // pred_check_branch
        %681 = sbr.rel (%p679) target = $region52
      $region51: #{_lambda_.1} parent=43 // pred_region
        %v682 = vld [vmem:[#allocation2] sm:$0xff]
        %v683 = vld [vmem:[%s2] sm:$0x1]
        %v685 = vlaneseq
        %v686 = vshrl.u32 %v685, 7
        %v687 = vsub.s32 0, %v686
        %v688 = vrot.slane %v683, %v687
        %v690 = vadd.f32 %v682, %v688
        %v691 = vmax.f32 %v690, 0.0
        %v692 = vpack.c.bf16 %v691, %v691
        %v693 = vld [vmem:[%s3] sm:$0xf]
        %v694 = vld [vmem:[%s3 + $0x4] sm:$0xf]
        %v695 = vld [vmem:[%s3 + $0x8] sm:$0xf]
        %v696 = vld [vmem:[%s3 + $0xc] sm:$0xf]
        %v697 = vld [vmem:[%s3 + $0x10] sm:$0xf]
        %v698 = vld [vmem:[%s3 + $0x14] sm:$0xf]
        %v699 = vld [vmem:[%s3 + $0x18] sm:$0xf]
        %v700 = vld [vmem:[%s3 + $0x1c] sm:$0xf]
        %v701 = vld [vmem:[%s3 + $0x20] sm:$0xf]
        %v702 = vld [vmem:[%s3 + $0x24] sm:$0xf]
        %v703 = vld [vmem:[%s3 + $0x28] sm:$0xf]
        %v704 = vld [vmem:[%s3 + $0x2c] sm:$0xf]
        %v705 = vld [vmem:[%s3 + $0x30] sm:$0xf]
        %v706 = vld [vmem:[%s3 + $0x34] sm:$0xf]
        %v707 = vld [vmem:[%s3 + $0x38] sm:$0xf]
        %v708 = vld [vmem:[%s3 + $0x3c] sm:$0xf]
        %v709 = vld [vmem:[%s4] sm:$0x1]
        %v711 = vlaneseq
        %v712 = vshrl.u32 %v711, 7
        %v713 = vsub.s32 0, %v712
        %v714 = vrot.slane %v709, %v713
        %v732 = vunpack.c.l.b16 %v693
        %v733 = vunpack.c.l.b16 %v694
        %v734 = vunpack.c.l.b16 %v695
        %v735 = vunpack.c.l.b16 %v696
        %v736 = vunpack.c.l.b16 %v697
        %v737 = vunpack.c.l.b16 %v698
        %v738 = vunpack.c.l.b16 %v699
        %v739 = vunpack.c.l.b16 %v700
        %v740 = vunpack.c.l.b16 %v701
        %v741 = vunpack.c.l.b16 %v702
        %v742 = vunpack.c.l.b16 %v703
        %v743 = vunpack.c.l.b16 %v704
        %v744 = vunpack.c.l.b16 %v705
        %v745 = vunpack.c.l.b16 %v706
        %v746 = vunpack.c.l.b16 %v707
        %v747 = vunpack.c.l.b16 %v708
        %v748 = vpack.c.b16 %v733, %v732
        %v749 = vpack.c.b16 %v735, %v734
        %v750 = vpack.c.b16 %v737, %v736
        %v751 = vpack.c.b16 %v739, %v738
        %v752 = vpack.c.b16 %v741, %v740
        %v753 = vpack.c.b16 %v743, %v742
        %v754 = vpack.c.b16 %v745, %v744
        %v755 = vpack.c.b16 %v747, %v746
        %764 = vmatprep.subr.bf16.mxu0 0
        %765 = vmatpush1.bf16.msra.mxu0 %v748
        %766 = vmatprep.subr.bf16.mxu0 0
        %767 = vmatpush1.bf16.msra.mxu0 %v749
        %768 = vmatprep.subr.bf16.mxu0 0
        %769 = vmatpush1.bf16.msra.mxu0 %v750
        %770 = vmatprep.subr.bf16.mxu0 0
        %771 = vmatpush1.bf16.msra.mxu0 %v751
        %772 = vmatprep.subr.bf16.mxu0 0
        %773 = vmatpush1.bf16.msra.mxu0 %v752
        %774 = vmatprep.subr.bf16.mxu0 0
        %775 = vmatpush1.bf16.msra.mxu0 %v753
        %776 = vmatprep.subr.bf16.mxu0 0
        %777 = vmatpush1.bf16.msra.mxu0 %v754
        %778 = vmatprep.subr.bf16.mxu0 0
        %779 = vmatpush1.bf16.msra.mxu0 %v755
        %780 = vmatprep.subr.bf16.mxu0 0
        %781 = vmatpush1.bf16.msra.mxu0 0
        %782 = vmatprep.subr.bf16.mxu0 0
        %783 = vmatpush1.bf16.msra.mxu0 0
        %784 = vmatprep.subr.bf16.mxu0 0
        %785 = vmatpush1.bf16.msra.mxu0 0
        %786 = vmatprep.subr.bf16.mxu0 0
        %787 = vmatpush1.bf16.msra.mxu0 0
        %788 = vmatprep.subr.bf16.mxu0 0
        %789 = vmatpush1.bf16.msra.mxu0 0
        %790 = vmatprep.subr.bf16.mxu0 0
        %791 = vmatpush1.bf16.msra.mxu0 0
        %792 = vmatprep.subr.bf16.mxu0 0
        %793 = vmatpush1.bf16.msra.mxu0 0
        %794 = vmatprep.subr.bf16.mxu0 0
        %795 = vmatpush1.bf16.msra.mxu0 0
        %796 = vmatprep.mubr.bf16.mxu0 0
        %797 = vmatmul.mubr.bf16.gmra.mrb[0].mxu0 %v692
        %v798 = vpop.f32.mrb[0].mxu0
        %v799 = vadd.f32 %v714, %v798
        %v800 = vpop.f32.mrb[0].mxu0
        %v801 = vpop.f32.mrb[0].mxu0
        %v802 = vpop.f32.mrb[0].mxu0
        %803 = vdwg.mxu0
        %v804 = vld [vmem:[%s312] sm:$0xff]
        %v805 = vmul.f32 %v799, %v804
        %806 = vst [vmem:[%s316] sm:$0xff] %v805
      $region52: #{_lambda_.1} parent=43 // pred_fallthru
        _
      %p807 = scmp.lt.s32.totalorder %s21, 0
      %s808 = scalar_select %p807, %s21, 0
      %s809 = smul.addr %s808, 8
      %s810 = scalar_lea.vmem %s6, %s809
      // Predicated region
      $region53: #{_lambda_.1} parent=43 // pred_check
        %p811 = pneg %p190
      $region54: #{_lambda_.1} parent=43 // pred_check_branch
        %813 = sbr.rel (%p811) target = $region56
      $region55: #{_lambda_.1} parent=43 // pred_region
        _
      $region56: #{_lambda_.1} parent=43 // pred_fallthru
        _
      // Predicated region
      $region57: #{_lambda_.1} parent=43 // pred_check
        %p814 = pneg %p190
      $region58: #{_lambda_.1} parent=43 // pred_check_branch
        %816 = sbr.rel (%p814) target = $region60
      $region59: #{_lambda_.1} parent=43 // pred_region
        %p817 = scmp.lt.s32.totalorder %s21, 0
        %s818 = scalar_select %p817, %s21, 0
        %s819 = smul.addr %s818, 8
        %s820 = scalar_lea.vmem %s6, %s819
      $region60: #{_lambda_.1} parent=43 // pred_fallthru
        _
    $region44: #{_lambda_.1} parent=5 // pred_fallthru
      _
    %p821 = scmp.le.s32.totalorder 2, %s12
    // Predicated region
    $region61: #{_lambda_.1} parent=5 // pred_check
      %p822 = pneg %p821
    $region62: #{_lambda_.1} parent=5 // pred_check_branch
      %824 = sbr.rel (%p822) target = $region64
    $region63: #{_lambda_.1} parent=5 // pred_region
      %s825 = ssub.s32 %s12, 2
    $region64: #{_lambda_.1} parent=5 // pred_fallthru
      _
  $region6: #{_lambda_.1} parent=0 // loop_footer
    %s16 = sadd.s32 1, %s12
  $region7: #{_lambda_.1} parent=0 // loop_footer_branch
    %11 = sbr.rel target = $region3
  $region8: #{_lambda_.1} parent=0 // loop_exit
    _

</llo_original>
